<compile_context>
chip_gen: v7x
topology: tpu7x:2x2x1
jax: 0.10.0
libtpu: 0.0.40
codegen_flags: <defaults>
</compile_context>

<pallas_src>
import functools

import jax
import jax.numpy as jnp
from jax.experimental import pallas as pl
from jax.experimental.pallas import tpu as pltpu


_WORKING_SET_BYTES = 20 * 1024 * 1024   # target VMEM working set for the logits pipeline
_VMEM_LIMIT_BYTES = 40 * 1024 * 1024    # explicit scoped-VMEM limit (safe on v5e/v6e/v7x)


def _round_up(n, m):
    return ((n + m - 1) // m) * m


def _cdiv(a, b):
    return -(-a // b)


def _choose_batch_tile(B, C, dtype, has_targets):
    """Rows per tile, sized by VMEM bytes (not rows)."""
    itemsize = jnp.dtype(dtype).itemsize
    row_align = 16 if itemsize == 2 else 8
    c_pad = _round_up(C, 128)                       # lane padding in VMEM
    # Per-row VMEM bytes: double-buffered native logits tile + ~2 f32
    # tile-sized temporaries (upcast / exp).
    per_row = c_pad * 2 * itemsize + 2 * c_pad * 4
    if has_targets:
        # double-buffered (tb, 1) int32 target block (lane-padded to 128)
        # + one extra f32 temp for the iota/compare/select gather.
        per_row += 2 * 128 * 4 + c_pad * 4
    tb = _WORKING_SET_BYTES // max(1, per_row)
    tb = min(tb, _round_up(B, row_align))           # no point exceeding the batch
    tb = max(row_align, (tb // row_align) * row_align)
    return tb


def _adv_loss_kernel_fixed_target(x_ref, out_ref, acc_ref, *,
                                  steps, tb, n_valid, full_tiles,
                                  inv_scale, target_class):
    """target-is-None branch: CE vs a single static class (no gather, no tgt DMA)."""
    p = pl.program_id(0)
    i = pl.program_id(1)
    tile_idx = p * steps + i

    @pl.when(i == 0)
    def _():
        acc_ref[0] = jnp.float32(0.0)

    xf = x_ref[...].astype(jnp.float32)                         # (tb, C)
    m = jnp.max(xf, axis=-1, keepdims=True)
    lse = jnp.log(jnp.sum(jnp.exp(xf - m), axis=-1, keepdims=True)) + m
    picked = xf[:, target_class:target_class + 1]               # static lane slice
    per_row = lse - picked                                      # (tb, 1)

    @pl.when(tile_idx < full_tiles)                             # fully-valid tiles
    def _():
        acc_ref[0] += jnp.sum(per_row)

    @pl.when(tile_idx >= full_tiles)                            # ragged / OOB tiles
    def _():
        row_ids = tile_idx * tb + jax.lax.broadcasted_iota(jnp.int32, (tb, 1), 0)
        acc_ref[0] += jnp.sum(jnp.where(row_ids < n_valid, per_row, 0.0))

    @pl.when(i == pl.num_programs(1) - 1)
    def _():
        out_ref[...] = jnp.full((8, 128), acc_ref[0] * jnp.float32(inv_scale),
                                dtype=jnp.float32)


def _adv_loss_kernel_gather(x_ref, tgt_ref, out_ref, acc_ref, *,
                            steps, tb, n_valid, full_tiles, inv_scale):
    """explicit-target branch: gather target logit via iota compare (VPU-friendly)."""
    p = pl.program_id(0)
    i = pl.program_id(1)
    tile_idx = p * steps + i

    @pl.when(i == 0)
    def _():
        acc_ref[0] = jnp.float32(0.0)

    xf = x_ref[...].astype(jnp.float32)                         # (tb, C)
    C = xf.shape[1]
    m = jnp.max(xf, axis=-1, keepdims=True)
    lse = jnp.log(jnp.sum(jnp.exp(xf - m), axis=-1, keepdims=True)) + m

    cls_ids = jax.lax.broadcasted_iota(jnp.int32, (tb, C), 1)   # (tb, C)
    tgt = tgt_ref[...]                                          # (tb, 1) int32
    picked = jnp.sum(jnp.where(cls_ids == tgt, xf, 0.0), axis=-1, keepdims=True)
    per_row = lse - picked                                      # (tb, 1)

    @pl.when(tile_idx < full_tiles)
    def _():
        acc_ref[0] += jnp.sum(per_row)

    @pl.when(tile_idx >= full_tiles)
    def _():
        row_ids = tile_idx * tb + jax.lax.broadcasted_iota(jnp.int32, (tb, 1), 0)
        acc_ref[0] += jnp.sum(jnp.where(row_ids < n_valid, per_row, 0.0))

    @pl.when(i == pl.num_programs(1) - 1)
    def _():
        out_ref[...] = jnp.full((8, 128), acc_ref[0] * jnp.float32(inv_scale),
                                dtype=jnp.float32)


def adv_loss(x, target=None, target_class=7, batch_tile=None):
    """Pallas implementation of AdvLoss.forward for [B, C] logits."""
    B, C = x.shape
    has_targets = target is not None
    if not has_targets and not (0 <= target_class < C):
        raise ValueError(f"target_class={target_class} out of range for C={C}")
    sign = -1.0 if has_targets else 1.0
    inv_scale = sign / float(B)

    itemsize = jnp.dtype(x.dtype).itemsize
    row_align = 16 if itemsize == 2 else 8
    tb = batch_tile if batch_tile is not None else _choose_batch_tile(
        B, C, x.dtype, has_targets)
    tb = max(row_align, _round_up(tb, row_align))

    num_tiles = _cdiv(B, tb)
    full_tiles = B // tb                       # tiles whose rows are all valid
    n_cores = 2 if num_tiles > 1 else 1        # leading "parallel" axis -> v7x 2-TC shard
    steps = _cdiv(num_tiles, n_cores)
    grid = (n_cores, steps)

    def block_index(p, i):
        # Clamp fully out-of-range logical tiles (from the n_cores rounding);
        # their rows are neutralized by the in-kernel row mask.
        return (jnp.minimum(p * steps + i, num_tiles - 1), 0)

    x_spec = pl.BlockSpec((tb, C), block_index)
    out_shape = jax.ShapeDtypeStruct((8 * n_cores, 128), jnp.float32)
    out_spec = pl.BlockSpec((8, 128), lambda p, i: (p, 0))
    scratch = [pltpu.SMEM((1,), jnp.float32)]

    compiler_params = pltpu.CompilerParams(
        dimension_semantics=("parallel", "arbitrary"),
        vmem_limit_bytes=_VMEM_LIMIT_BYTES)
    cost = pl.CostEstimate(
        flops=6 * B * C,
        transcendentals=B * C,
        bytes_accessed=B * C * itemsize + (4 * B if has_targets else 0)
        + 8 * n_cores * 128 * 4)

    if not has_targets:
        kernel = functools.partial(
            _adv_loss_kernel_fixed_target,
            steps=steps, tb=tb, n_valid=B, full_tiles=full_tiles,
            inv_scale=inv_scale, target_class=target_class)
        out = pl.pallas_call(
            kernel,
            out_shape=out_shape,
            grid_spec=pltpu.PrefetchScalarGridSpec(
                num_scalar_prefetch=0,
                grid=grid,
                in_specs=[x_spec],
                out_specs=out_spec,
                scratch_shapes=scratch),
            compiler_params=compiler_params,
            cost_estimate=cost,
        )(x)
    else:
        tgt = target.astype(jnp.int32).reshape(B, 1)
        kernel = functools.partial(
            _adv_loss_kernel_gather,
            steps=steps, tb=tb, n_valid=B, full_tiles=full_tiles,
            inv_scale=inv_scale)
        out = pl.pallas_call(
            kernel,
            out_shape=out_shape,
            grid_spec=pltpu.PrefetchScalarGridSpec(
                num_scalar_prefetch=0,
                grid=grid,
                in_specs=[x_spec, pl.BlockSpec((tb, 1), block_index)],
                out_specs=out_spec,
                scratch_shapes=scratch),
            compiler_params=compiler_params,
            cost_estimate=cost,
        )(x, tgt)

    # Per-core partials already carry sign and the 1/B mean; just sum them.
    return jnp.sum(out[::8, 0])


def _reference(x, target=None, target_class=7):
    B, C = x.shape
    if target is None:
        target = jnp.full((B,), target_class, dtype=jnp.int32)
        sign = 1.0
    else:
        sign = -1.0
    xf = x.astype(jnp.float32)
    lse = jax.scipy.special.logsumexp(xf, axis=-1)
    picked = jnp.take_along_axis(xf, target.reshape(-1, 1).astype(jnp.int32), axis=-1)[:, 0]
    return sign * jnp.mean(lse - picked)


if __name__ == "__main__":
    key = jax.random.PRNGKey(0)
    k1, k2, k3 = jax.random.split(key, 3)

    # Small (B, C) logits; ragged B=21 with batch_tile=8 -> num_tiles=3 over a
    # (2, 2) grid exercises the accumulator, the parallel partials, the clamped
    # out-of-range tile, and the ragged-row masking.
    B, C = 21, 16
    x = jax.random.normal(k1, (B, C), dtype=jnp.float32)
    explicit_target = jax.random.randint(k2, (B,), 0, C, dtype=jnp.int32)

    out_none = adv_loss(x, None, batch_tile=8)               # target is None branch
    out_tgt = adv_loss(x, explicit_target, batch_tile=8)     # explicit-target branch
    out_none_auto = adv_loss(x, None)                        # byte-driven default tile
    out_tgt_auto = adv_loss(x, explicit_target)              # (single ragged tile)
    jax.block_until_ready((out_none, out_tgt, out_none_auto, out_tgt_auto))

    ref_none = _reference(x, None)
    ref_tgt = _reference(x, explicit_target)
    assert jnp.allclose(out_none, ref_none, atol=1e-5, rtol=1e-5), (out_none, ref_none)
    assert jnp.allclose(out_tgt, ref_tgt, atol=1e-5, rtol=1e-5), (out_tgt, ref_tgt)
    assert jnp.allclose(out_none_auto, ref_none, atol=1e-5, rtol=1e-5), (out_none_auto, ref_none)
    assert jnp.allclose(out_tgt_auto, ref_tgt, atol=1e-5, rtol=1e-5), (out_tgt_auto, ref_tgt)

    # bf16 logits stay bf16 in HBM / BlockSpec and are upcast only in-kernel.
    xb = jax.random.normal(k3, (37, 128), dtype=jnp.bfloat16)
    out_bf16 = adv_loss(xb, None, batch_tile=16)
    jax.block_until_ready(out_bf16)
    ref_bf16 = _reference(xb, None)
    assert jnp.allclose(out_bf16, ref_bf16, atol=2e-3, rtol=2e-3), (out_bf16, ref_bf16)

    print("KERNEL_OK")
</pallas_src>

<mosaic_0001>
module attributes {stable_mosaic.version = 11 : i64} {
  func.func @_adv_loss_kernel_fixed_target(%arg0: i32, %arg1: i32, %arg2: memref<8x16xf32, #tpu.memory_space<vmem>>, %arg3: memref<8x128xf32, #tpu.memory_space<vmem>>, %arg4: memref<1xf32, #tpu.memory_space<smem>>) attributes {dimension_semantics = [#tpu.dimension_semantics<parallel>, #tpu.dimension_semantics<arbitrary>], iteration_bounds = array<i64: 2, 2>, scalar_prefetch = 0 : i64, scratch_operands = 1 : i64, tpu.core_type = #tpu.core_type<tc>, window_params = [{transform_indices = @transform_0, window_bounds = array<i64: 8, 16>}, {transform_indices = @transform_1, window_bounds = array<i64: 8, 128>}]} {
    %c2_i32 = arith.constant 2 : i32
    %0 = arith.muli %arg0, %c2_i32 : i32
    %1 = arith.addi %0, %arg1 : i32
    %c0_i32 = arith.constant 0 : i32
    %2 = arith.cmpi eq, %arg1, %c0_i32 : i32
    %3 = arith.extui %2 : i1 to i32
    %c0_i32_0 = arith.constant 0 : i32
    %4 = arith.cmpi ne, %3, %c0_i32_0 : i32
    scf.if %4 {
      %cst_8 = arith.constant 0.000000e+00 : f32
      %c0_9 = arith.constant 0 : index
      %26 = memref.load %arg4[%c0_9] : memref<1xf32, #tpu.memory_space<smem>>
      memref.store %cst_8, %arg4[%c0_9] : memref<1xf32, #tpu.memory_space<smem>>
    } else {
    }
    %c0 = arith.constant 0 : index
    %c0_1 = arith.constant 0 : index
    %5 = vector.load %arg2[%c0, %c0_1] : memref<8x16xf32, #tpu.memory_space<vmem>>, vector<8x16xf32>
    %cst = arith.constant dense<0xFF800000> : vector<8xf32>
    %6 = vector.multi_reduction <maximumf>, %5, %cst [1] : vector<8x16xf32> to vector<8xf32>
    %7 = vector.shape_cast %6 : vector<8xf32> to vector<8x1xf32>
    %8 = vector.broadcast %7 : vector<8x1xf32> to vector<8x16xf32>
    %9 = arith.subf %5, %8 : vector<8x16xf32>
    %10 = math.exp %9 : vector<8x16xf32>
    %cst_2 = arith.constant dense<0.000000e+00> : vector<8xf32>
    %11 = vector.multi_reduction <add>, %10, %cst_2 [1] : vector<8x16xf32> to vector<8xf32>
    %12 = vector.shape_cast %11 : vector<8xf32> to vector<8x1xf32>
    %13 = math.log %12 : vector<8x1xf32>
    %14 = arith.addf %13, %7 : vector<8x1xf32>
    %15 = vector.extract_strided_slice %5 {offsets = [0, 7], sizes = [8, 1], strides = [1, 1]} : vector<8x16xf32> to vector<8x1xf32>
    %16 = arith.subf %14, %15 : vector<8x1xf32>
    %c2_i32_3 = arith.constant 2 : i32
    %17 = arith.cmpi slt, %1, %c2_i32_3 : i32
    %18 = arith.extui %17 : i1 to i32
    %c0_i32_4 = arith.constant 0 : i32
    %19 = arith.cmpi ne, %18, %c0_i32_4 : i32
    scf.if %19 {
      %c0_8 = arith.constant 0 : index
      %26 = memref.load %arg4[%c0_8] : memref<1xf32, #tpu.memory_space<smem>>
      %27 = vector.shape_cast %16 : vector<8x1xf32> to vector<1x8x1xf32>
      %cst_9 = arith.constant dense<0.000000e+00> : vector<1xf32>
      %28 = vector.multi_reduction <add>, %27, %cst_9 [1, 2] : vector<1x8x1xf32> to vector<1xf32>
      %29 = vector.shape_cast %28 : vector<1xf32> to vector<1x1x1xf32>
      %30 = vector.extract %29[0, 0, 0] : f32 from vector<1x1x1xf32>
      %31 = arith.addf %26, %30 : f32
      %c0_10 = arith.constant 0 : index
      %32 = memref.load %arg4[%c0_10] : memref<1xf32, #tpu.memory_space<smem>>
      memref.store %31, %arg4[%c0_10] : memref<1xf32, #tpu.memory_space<smem>>
    } else {
    }
    %c2_i32_5 = arith.constant 2 : i32
    %20 = arith.cmpi sge, %1, %c2_i32_5 : i32
    %21 = arith.extui %20 : i1 to i32
    %c0_i32_6 = arith.constant 0 : i32
    %22 = arith.cmpi ne, %21, %c0_i32_6 : i32
    scf.if %22 {
      %c8_i32 = arith.constant 8 : i32
      %26 = arith.muli %1, %c8_i32 : i32
      %27 = tpu.iota {dimensions = array<i32: 0>} : vector<8x1xi32>
      %28 = vector.broadcast %26 : i32 to vector<8x1xi32>
      %29 = arith.addi %28, %27 : vector<8x1xi32>
      %c0_8 = arith.constant 0 : index
      %30 = memref.load %arg4[%c0_8] : memref<1xf32, #tpu.memory_space<smem>>
      %c21_i32 = arith.constant 21 : i32
      %31 = vector.broadcast %c21_i32 : i32 to vector<8x1xi32>
      %32 = arith.cmpi slt, %29, %31 : vector<8x1xi32>
      %cst_9 = arith.constant 0.000000e+00 : f32
      %33 = vector.broadcast %cst_9 : f32 to vector<8x1xf32>
      %34 = arith.select %32, %16, %33 : vector<8x1xi1>, vector<8x1xf32>
      %35 = vector.shape_cast %34 : vector<8x1xf32> to vector<1x8x1xf32>
      %cst_10 = arith.constant dense<0.000000e+00> : vector<1xf32>
      %36 = vector.multi_reduction <add>, %35, %cst_10 [1, 2] : vector<1x8x1xf32> to vector<1xf32>
      %37 = vector.shape_cast %36 : vector<1xf32> to vector<1x1x1xf32>
      %38 = vector.extract %37[0, 0, 0] : f32 from vector<1x1x1xf32>
      %39 = arith.addf %30, %38 : f32
      %c0_11 = arith.constant 0 : index
      %40 = memref.load %arg4[%c0_11] : memref<1xf32, #tpu.memory_space<smem>>
      memref.store %39, %arg4[%c0_11] : memref<1xf32, #tpu.memory_space<smem>>
    } else {
    }
    %c1_i32 = arith.constant 1 : i32
    %23 = arith.cmpi eq, %arg1, %c1_i32 : i32
    %24 = arith.extui %23 : i1 to i32
    %c0_i32_7 = arith.constant 0 : i32
    %25 = arith.cmpi ne, %24, %c0_i32_7 : i32
    scf.if %25 {
      %c0_8 = arith.constant 0 : index
      %26 = memref.load %arg4[%c0_8] : memref<1xf32, #tpu.memory_space<smem>>
      %cst_9 = arith.constant 0.0476190485 : f32
      %27 = arith.mulf %26, %cst_9 : f32
      %28 = vector.broadcast %27 : f32 to vector<8x128xf32>
      %c0_10 = arith.constant 0 : index
      %c0_11 = arith.constant 0 : index
      %29 = vector.load %arg3[%c0_10, %c0_11] : memref<8x128xf32, #tpu.memory_space<vmem>>, vector<8x128xf32>
      tpu.vector_store %arg3[%c0_10, %c0_11], %28 {strides = array<i32>} : memref<8x128xf32, #tpu.memory_space<vmem>>, vector<8x128xf32>,
    } else {
    }
    return
  }
  func.func @transform_0(%arg0: i32, %arg1: i32) -> (i32, i32) {
    %c2_i32 = arith.constant 2 : i32
    %0 = arith.muli %arg0, %c2_i32 : i32
    %1 = arith.addi %0, %arg1 : i32
    %c2_i32_0 = arith.constant 2 : i32
    %2 = arith.minsi %1, %c2_i32_0 : i32
    %c0_i32 = arith.constant 0 : i32
    %c0_i32_1 = arith.constant 0 : i32
    return %2, %c0_i32 : i32, i32
  }
  func.func @transform_1(%arg0: i32, %arg1: i32) -> (i32, i32) {
    %c0_i32 = arith.constant 0 : i32
    %c0_i32_0 = arith.constant 0 : i32
    return %arg0, %c0_i32 : i32, i32
  }
}

</mosaic_0001>

<llo_original>
// kernel: tpu_custom_call.1
$region0: #{tpu_custom_call.1}
  #allocation0 [shape = 'u32[]', space=smem, size = 0x4, offset = 0x4, fixed_abs, tag = 'smem constant byte address 0x4 - core index']
  #allocation1 [shape = 'u32[144,128]{1,0:T(1,128)}', space=vmem, size = 0x12000, scoped, tag = 'internal scratch']
  #allocation2 [shape = 'f32[1]{0:T(128)}', space=smem, size = 0x200, scoped, tag = 'scratch operand']
  %s0 = inlined_call_operand.vmem [shape: f32[21,16], index: 0, kind: input, shape index: {}]
  %s1 = inlined_call_operand.hbm [shape: f32[16,128], index: 1, kind: output, shape index: {}]
  %s2 = sld [smem:[#allocation0]]
  $region53: #{tpu_custom_call.1} parent=0
    _
  %s4 = ssub.s32 1, %s2
  %s5 = scalar_select 0, %s4, %s2
  $region1: #{tpu_custom_call.1} parent=0
    #allocation3 [shape = 'u8[8192]{0}', space=vmem, size = 0x2000, scoped, tag = 'output window, operand 0']
    #allocation4 [shape = 's32[2]{0}', space=sflag, size = 0x8, scoped, tag = 'scoped memory for tpu_custom_call.1']
    %6 = vsyncpa [#allocation4], 0
    %s7 = scalar_lea.sflag [#allocation4], 1
    %8 = vsyncpa %s7, 0
    loop: start=0, step=1, limit=6
    $region2: #{tpu_custom_call.1} parent=1 // loop_pre_header
      _
    $region3: #{tpu_custom_call.1} parent=1 // loop_header
      %s10 = sphi 0, %s14
      %p11 = scmp.ge.s32.totalorder %s10, 6
      %s17 = sphi 0, %s29
      %s18 = sphi 0, %s25
      %s19 = sphi 0, %s17
      %s20 = sphi 0, %s18
      %s21 = sphi 0, %s19
      %s22 = sphi 0, %s20
      %s40 = sphi 0, %s42
      %s43 = sphi 0, %s40
      %s44 = sphi 0, %s43
      %s60 = sphi 0, %s44
      %s66 = sphi 0, %s68
      %s69 = sphi 0, %s66
      %s70 = sphi 0, %s69
      %s86 = sphi 0, %s70
    $region4: #{tpu_custom_call.1} parent=1 // loop_header_branch
      %13 = sbr.rel (%p11) target = $region8
    $region5: #{tpu_custom_call.1} parent=1 // loop_body
      %s15 = ssub.s32 %s10, 1
      %s16 = ssub.s32 %s10, 2
      %s23 = sadd.s32 1, %s18
      %p24 = scmp.ge.s32.totalorder %s23, 2
      %s25 = scalar_select %p24, 0, %s23
      %s26 = sadd.s32 1, %s17
      %s27 = scalar_select %p24, %s26, %s17
      %p28 = scmp.ge.s32.totalorder %s27, 2
      %s29 = scalar_select %p28, 0, %s27
      %s30 = smul.u32 %s17, 2
      %s31 = sadd.s32 %s30, %s18
      %p32 = scmp.lt.s32.totalorder %s31, 2
      %s33 = scalar_select %p32, %s31, 2
      %s34 = smul.u32 %s29, 2
      %s35 = sadd.s32 %s34, %s25
      %p36 = scmp.lt.s32.totalorder %s35, 2
      %s37 = scalar_select %p36, %s35, 2
      %s38 = ssub.s32 %s33, %s37
      %p39 = scmp.eq.s32.totalorder %s38, 0
      %s41 = sadd.s32 %s40, 1
      %s42 = scalar_select %p39, %s40, %s41
      %p45 = pneg %p39
      %p46 = scmp.eq.s32.totalorder %s10, 3
      %p47 = por %p45, %p46
      %p48 = scmp.ne.s32.totalorder %s40, %s43
      %p49 = scmp.eq.s32.totalorder %s10, 0
      %p50 = por %p48, %p49
      %p51 = scmp.ne.s32.totalorder %s40, %s43
      %p52 = scmp.eq.s32.totalorder %s15, 3
      %p53 = por %p51, %p52
      %p54 = scmp.ne.s32.totalorder %s43, %s44
      %p55 = scmp.eq.s32.totalorder %s15, 0
      %p56 = por %p54, %p55
      %p57 = scmp.ne.s32.totalorder %s43, %s44
      %p58 = scmp.eq.s32.totalorder %s16, 3
      %p59 = por %p57, %p58
      %p61 = scmp.ne.s32.totalorder %s44, %s60
      %p62 = scmp.eq.s32.totalorder %s16, 0
      %p63 = por %p61, %p62
      %s64 = ssub.s32 %s17, %s29
      %p65 = scmp.eq.s32.totalorder %s64, 0
      %s67 = sadd.s32 %s66, 1
      %s68 = scalar_select %p65, %s66, %s67
      %p71 = pneg %p65
      %p72 = scmp.eq.s32.totalorder %s10, 3
      %p73 = por %p71, %p72
      %p74 = scmp.ne.s32.totalorder %s66, %s69
      %p75 = scmp.eq.s32.totalorder %s10, 0
      %p76 = por %p74, %p75
      %p77 = scmp.ne.s32.totalorder %s66, %s69
      %p78 = scmp.eq.s32.totalorder %s15, 3
      %p79 = por %p77, %p78
      %p80 = scmp.ne.s32.totalorder %s69, %s70
      %p81 = scmp.eq.s32.totalorder %s15, 0
      %p82 = por %p80, %p81
      %p83 = scmp.ne.s32.totalorder %s69, %s70
      %p84 = scmp.eq.s32.totalorder %s16, 3
      %p85 = por %p83, %p84
      %p87 = scmp.ne.s32.totalorder %s70, %s86
      %p88 = scmp.eq.s32.totalorder %s16, 0
      %p89 = por %p87, %p88
      %p90 = scmp.le.s32.totalorder 1, %s10
      %p91 = scmp.lt.s32.totalorder %s10, 5
      %p92 = pnand %p90, %p91
      %p93 = pneg %p92
      // Predicated region
      $region9: #{tpu_custom_call.1} parent=5 // pred_check
        _
      $region10: #{tpu_custom_call.1} parent=5 // pred_check_branch
        %95 = sbr.rel (%p92) target = $region12
      $region11: #{tpu_custom_call.1} parent=5 // pred_region
        %s96 = ssub.s32 %s10, 1
      $region12: #{tpu_custom_call.1} parent=5 // pred_fallthru
        _
      %p97 = scmp.lt.s32.totalorder %s10, 4
      // Predicated region
      $region13: #{tpu_custom_call.1} parent=5 // pred_check
        %p98 = pneg %p97
      $region14: #{tpu_custom_call.1} parent=5 // pred_check_branch
        %100 = sbr.rel (%p98) target = $region16
      $region15: #{tpu_custom_call.1} parent=5 // pred_region
        // Predicated region
        $region17: #{tpu_custom_call.1} parent=15 // pred_check
          %p101 = pneg %p50
        $region18: #{tpu_custom_call.1} parent=15 // pred_check_branch
          %103 = sbr.rel (%p101) target = $region20
        $region19: #{tpu_custom_call.1} parent=15 // pred_region
          %s104 = smul.u32 %s17, 2
          %s105 = sadd.s32 %s104, %s18
          %p106 = scmp.lt.s32.totalorder %s105, 2
          %s107 = scalar_select %p106, %s105, 2
          %p108 = scmp.lt.s32.totalorder %s107, 2
          %s109 = scalar_select %p108, %s107, 2
          %s110 = smul.addr %s109, 8
          %s111 = scalar_lea.vmem %s0, %s110
          %s112 = smul.u32 %s17, 2
          %s113 = sadd.s32 %s112, %s18
          %p114 = scmp.lt.s32.totalorder %s113, 2
          %s115 = scalar_select %p114, %s113, 2
        $region20: #{tpu_custom_call.1} parent=15 // pred_fallthru
          _
      $region16: #{tpu_custom_call.1} parent=5 // pred_fallthru
        _
      %p116 = scmp.le.s32.totalorder 1, %s10
      %p117 = scmp.lt.s32.totalorder %s10, 5
      %p118 = pnand %p116, %p117
      %p119 = pneg %p118
      // Predicated region
      $region21: #{tpu_custom_call.1} parent=5 // pred_check
        _
      $region22: #{tpu_custom_call.1} parent=5 // pred_check_branch
        %121 = sbr.rel (%p118) target = $region24
      $region23: #{tpu_custom_call.1} parent=5 // pred_region
        %s122 = ssub.s32 %s10, 1
        %s123 = smul.u32 %s19, 2
        %s124 = sadd.s32 %s123, %s20
        %p125 = scmp.lt.s32.totalorder %s124, 2
        %s126 = scalar_select %p125, %s124, 2
        %p127 = scmp.lt.s32.totalorder %s126, 2
        %s128 = scalar_select %p127, %s126, 2
        %s129 = smul.addr %s128, 8
        %s130 = scalar_lea.vmem %s0, %s129
        %p131 = pneg %p56
        %p132 = pneg %p53
        %p133 = pneg %p82
        %p134 = pneg %p79
        %s135 = sand.u32 %s69, 1
        %s136 = scalar_lea.sflag [#allocation4], %s135
        %s137 = sand.u32 %s69, 1
        %s138 = smul.addr %s137, 8
        %s139 = scalar_lea.vmem [#allocation3], %s138
        %s140 = smul.u32 %s19, 2
        %s141 = sadd.s32 %s140, %s20
        %p142 = scmp.lt.s32.totalorder %s141, 2
        %s143 = scalar_select %p142, %s141, 2
        %p144 = scmp.lt.s32.totalorder %s143, 2
        %s145 = scalar_select %p144, %s143, 2
        %s146 = smul.addr %s145, 8
        %s147 = scalar_lea.vmem %s0, %s146
        %s148 = smul.u32 %s19, 2
        %s149 = sadd.s32 %s148, %s20
        %p150 = scmp.lt.s32.totalorder %s149, 2
        %s151 = scalar_select %p150, %s149, 2
        %s152 = smul.u32 %s19, 2
        %s153 = sadd.s32 %s152, %s20
        %p154 = scmp.eq.s32.totalorder %s20, 0
        // Predicated region
        $region25: #{tpu_custom_call.1} parent=23 // pred_check
          %p155 = pneg %p154
        $region26: #{tpu_custom_call.1} parent=23 // pred_check_branch
          %157 = sbr.rel (%p155) target = $region28
        $region27: #{tpu_custom_call.1} parent=23 // pred_region
          %s158 = scalar_lea.smem [#allocation2], 0
          %159 = sst [smem:[%s158]] 0.0
        $region28: #{tpu_custom_call.1} parent=23 // pred_fallthru
          _
        %v160 = vld [vmem:[%s147] sm:$0xff]
        %vm161 = vcmask 130048
        %v162 = vsel %vm161, %v160, -inf
        %163 = vmax.xlane.f32.xlu0 %v162
        %v164 = vpop.xlane.xlu0 %163
        %v165 = vsub.f32 %v160, %v164
        %v166 = vmul.f32 %v165, 1.442695
        %v167 = vpow.pop %v166
        %v168 = vsel %vm161, %v167, 0.0
        %169 = vadd.xlane.f32.xlu0 %v168
        %v170 = vpop.xlane.xlu0 %169
        %v171 = vlog2.pop %v170
        %v172 = vmul.f32 %v171, 0.6931472
        %v173 = vadd.f32 %v172, %v164
        %v174 = vsub.f32 %v173, %v160
        %p175 = scmp.lt.s32.totalorder %s153, 2
        // Predicated region
        $region29: #{tpu_custom_call.1} parent=23 // pred_check
          %p176 = pneg %p175
        $region30: #{tpu_custom_call.1} parent=23 // pred_check_branch
          %178 = sbr.rel (%p176) target = $region32
        $region31: #{tpu_custom_call.1} parent=23 // pred_region
          %s179 = sld [smem:[#allocation2]]
          %181 = vrot.lane.b32.xlu0 %v174, 121
          %v182 = vpop.permute.xlu0 %181
          %vm184 = vcmask 7168
          %v185 = vsel %vm184, %v182, 0.0
          %186 = vadd.xlane.f32.xlu0 %v185
          %v187 = vpop.xlane.xlu0 %186
          %v188 = vrot.slane %v187, 4
          %v189 = vadd.f32 %v187, %v188
          %v190 = vrot.slane %v189, 2
          %v191 = vadd.f32 %v189, %v190
          %v192 = vrot.slane %v191, 1
          %v193 = vadd.f32 %v191, %v192
          %s194 = vtos %v193
          %s195 = sadd.f32 %s179, %s194
          %s196 = scalar_lea.smem [#allocation2], 0
          %197 = sst [smem:[%s196]] %s195
        $region32: #{tpu_custom_call.1} parent=23 // pred_fallthru
          _
        %p198 = scmp.ge.s32.totalorder %s153, 2
        // Predicated region
        $region33: #{tpu_custom_call.1} parent=23 // pred_check
          %p199 = pneg %p198
        $region34: #{tpu_custom_call.1} parent=23 // pred_check_branch
          %201 = sbr.rel (%p199) target = $region36
        $region35: #{tpu_custom_call.1} parent=23 // pred_region
          %s202 = smul.u32 %s153, 8
          %v203 = vlaneseq
          %v204 = vshrl.u32 %v203, 7
          %v205 = vstv %s202
          %v206 = vadd.s32 %v205, %v204
          %s207 = sld [smem:[#allocation2]]
          %vm208 = vcmp.lt.s32.totalorder %v206, 21
          %v209 = vsel %vm208, %v174, 0.0
          %211 = vrot.lane.b32.xlu0 %v209, 121
          %v212 = vpop.permute.xlu0 %211
          %vm214 = vcmask 7168
          %v215 = vsel %vm214, %v212, 0.0
          %216 = vadd.xlane.f32.xlu0 %v215
          %v217 = vpop.xlane.xlu0 %216
          %v218 = vrot.slane %v217, 4
          %v219 = vadd.f32 %v217, %v218
          %v220 = vrot.slane %v219, 2
          %v221 = vadd.f32 %v219, %v220
          %v222 = vrot.slane %v221, 1
          %v223 = vadd.f32 %v221, %v222
          %s224 = vtos %v223
          %s225 = sadd.f32 %s207, %s224
          %s226 = scalar_lea.smem [#allocation2], 0
          %227 = sst [smem:[%s226]] %s225
        $region36: #{tpu_custom_call.1} parent=23 // pred_fallthru
          _
        %p228 = scmp.eq.s32.totalorder %s20, 1
        // Predicated region
        $region37: #{tpu_custom_call.1} parent=23 // pred_check
          %p229 = pneg %p228
        $region38: #{tpu_custom_call.1} parent=23 // pred_check_branch
          %231 = sbr.rel (%p229) target = $region40
        $region39: #{tpu_custom_call.1} parent=23 // pred_region
          %s232 = sld [smem:[#allocation2]]
          %s233 = smul.f32 %s232, 0.04761905
          %v234 = vstv %s233
          %235 = vst [vmem:[%s139] sm:$0xff] %v234
        $region40: #{tpu_custom_call.1} parent=23 // pred_fallthru
          _
        %s236 = sand.u32 %s69, 1
        %s237 = scalar_lea.sflag [#allocation4], %s236
        %s238 = sand.u32 %s69, 1
        %s239 = smul.addr %s238, 8
        %s240 = scalar_lea.vmem [#allocation3], %s239
        // Predicated region
        $region41: #{tpu_custom_call.1} parent=23 // pred_check
          %p241 = pneg %p79
        $region42: #{tpu_custom_call.1} parent=23 // pred_check_branch
          %243 = sbr.rel (%p241) target = $region44
        $region43: #{tpu_custom_call.1} parent=23 // pred_region
          %s245 = ssub.s32 128, 128
          %246 = vsyncadd %s237, %s245
          %s247 = smul.addr %s19, 128
          %s248 = scalar_lea.hbm %s1, %s247
          %s250 = sshll.u32 %s240, 4
          %s251 = int_to_ptr.vmem [resolvable:$true] %s250
          %253 = dma.vmem_to_hbm [thread:$0]  %s251, 128, %s248, %s237
        $region44: #{tpu_custom_call.1} parent=23 // pred_fallthru
          _
      $region24: #{tpu_custom_call.1} parent=5 // pred_fallthru
        _
      %p254 = scmp.le.s32.totalorder 2, %s10
      // Predicated region
      $region45: #{tpu_custom_call.1} parent=5 // pred_check
        %p255 = pneg %p254
      $region46: #{tpu_custom_call.1} parent=5 // pred_check_branch
        %257 = sbr.rel (%p255) target = $region48
      $region47: #{tpu_custom_call.1} parent=5 // pred_region
        %s258 = ssub.s32 %s10, 2
        // Predicated region
        $region49: #{tpu_custom_call.1} parent=47 // pred_check
          %p259 = pneg %p85
        $region50: #{tpu_custom_call.1} parent=47 // pred_check_branch
          %261 = sbr.rel (%p259) target = $region52
        $region51: #{tpu_custom_call.1} parent=47 // pred_region
          %s262 = sand.u32 %s70, 1
          %s263 = scalar_lea.sflag [#allocation4], %s262
          %s264 = sand.u32 %s70, 1
          %s265 = smul.addr %s264, 8
          %s266 = scalar_lea.vmem [#allocation3], %s265
          %267 = dma.done %s263, 128
        $region52: #{tpu_custom_call.1} parent=47 // pred_fallthru
          _
      $region48: #{tpu_custom_call.1} parent=5 // pred_fallthru
        _
    $region6: #{tpu_custom_call.1} parent=1 // loop_footer
      %s14 = sadd.s32 1, %s10
    $region7: #{tpu_custom_call.1} parent=1 // loop_footer_branch
      %9 = sbr.rel target = $region3
    $region8: #{tpu_custom_call.1} parent=1 // loop_exit
      _
    %268 = vsyncpa [#allocation4], 1
    %s269 = scalar_lea.sflag [#allocation4], 1
    %270 = vsyncpa %s269, 1

</llo_original>
